<compile_context>
chip_gen: v7x
topology: tpu7x:2x2x1
jax: 0.10.0
libtpu: 0.0.40
codegen_flags: <defaults>
</compile_context>

<pallas_src>
import jax
import jax.numpy as jnp
from jax.experimental import pallas as pl
from jax.experimental.pallas import tpu as pltpu

LANE = 128
BF16_SUBLANE = 16  # bf16 packs 16 rows per vreg


def _round_up(x, m):
    return (x + m - 1) // m * m


def _cdiv(a, b):
    return (a + b - 1) // b


def _actor_kernel(x_ref, w1_ref, b1_ref, w2_ref, b2_ref, w3_ref, b3_ref,
                  probs_ref):
    # ---- Layer 1: Linear (bf16 MXU matmul, f32 accumulation) + ReLU ----
    h1 = jnp.dot(x_ref[...], w1_ref[...], preferred_element_type=jnp.float32)
    h1 = jnp.maximum(h1 + b1_ref[...], 0.0)          # b1 is (1, H1), broadcasts

    # ---- Layer 2: Linear + ReLU ----
    h2 = jnp.dot(h1.astype(jnp.bfloat16), w2_ref[...],
                 preferred_element_type=jnp.float32)
    h2 = jnp.maximum(h2 + b2_ref[...], 0.0)

    # ---- Layer 3: Linear -> logits (lane-padded to a multiple of 128) ----
    logits = jnp.dot(h2.astype(jnp.bfloat16), w3_ref[...],
                     preferred_element_type=jnp.float32)
    logits = logits + b3_ref[...]      # padded lanes carry -1e30 -> exp == 0

    # ---- Softmax(dim=-1), numerically stable, EXACT normalization ----
    m = jnp.max(logits, axis=-1, keepdims=True)
    e = jnp.exp(logits - m)
    denom = jnp.sum(e, axis=-1, keepdims=True)
    probs_ref[...] = (e / denom).astype(probs_ref.dtype)


def _batch_tiling(batch, block_m):
    """Pick (tile_m, grid_m, padded_batch) for the batch axis."""
    block_m = max(BF16_SUBLANE, _round_up(block_m, BF16_SUBLANE))
    if batch >= 32:
        # Cap the tile so the grid has >= 2 steps: lets the "parallel" batch
        # axis shard across v7x's two TensorCores.
        tm = min(block_m, _round_up(_cdiv(batch, 2), BF16_SUBLANE))
    else:
        tm = min(block_m, _round_up(batch, BF16_SUBLANE))
    grid_m = _cdiv(batch, tm)
    # Shrink the tile back so total padding waste is bounded by < one tile.
    tm = _round_up(_cdiv(batch, grid_m), BF16_SUBLANE)
    return tm, grid_m, grid_m * tm


def actor_forward(state, params, *, block_m=1024, out_dtype=jnp.float32,
                  trim_output=True):
    """ActorNetwork MLP on TPU via a single batch-tiled Pallas kernel.

    Returns the Categorical probabilities. With trim_output=True the result is
    (batch, n_actions) to match the PyTorch module; with trim_output=False the
    padded lane-dense (batch_pad, round_up(n_actions, 128)) buffer is returned
    so the consumer can slice lazily (avoids an extra HBM round-trip).
    """
    w1, b1, w2, b2, w3, b3 = params
    batch, state_dim = state.shape
    h1_dim = w1.shape[1]
    h2_dim = w2.shape[1]
    n_actions = w3.shape[1]

    na_pad = _round_up(n_actions, LANE)
    tm, grid_m, batch_pad = _batch_tiling(batch, block_m)

    # Inputs: bf16 for the MXU; extra batch rows zero-padded (their logits stay
    # finite and are sliced away by the consumer).
    x = state.astype(jnp.bfloat16)
    if batch_pad != batch:
        x = jnp.pad(x, ((0, batch_pad - batch), (0, 0)))

    # Weights bf16; biases f32. Final layer lane-padded: zero weights and
    # -1e30 bias on padded lanes so exp(...) == 0 and the softmax over the
    # first n_actions lanes is unchanged.
    w1b = w1.astype(jnp.bfloat16)
    w2b = w2.astype(jnp.bfloat16)
    b1f = b1.reshape(1, -1).astype(jnp.float32)
    b2f = b2.reshape(1, -1).astype(jnp.float32)
    w3p = jnp.pad(w3, ((0, 0), (0, na_pad - n_actions))).astype(jnp.bfloat16)
    b3p = jnp.pad(b3.reshape(1, -1).astype(jnp.float32),
                  ((0, 0), (0, na_pad - n_actions)), constant_values=-1e30)

    out_bytes = jnp.dtype(out_dtype).itemsize
    flops = 2 * batch_pad * (state_dim * h1_dim + h1_dim * h2_dim
                             + h2_dim * na_pad)
    transcendentals = batch_pad * na_pad  # exp in the softmax
    bytes_accessed = (x.size * 2 + batch_pad * na_pad * out_bytes
                      + (w1b.size + w2b.size + w3p.size) * 2
                      + (h1_dim + h2_dim + na_pad) * 4)

    out = pl.pallas_call(
        _actor_kernel,
        out_shape=jax.ShapeDtypeStruct((batch_pad, na_pad), out_dtype),
        grid=(grid_m,),
        in_specs=[
            pl.BlockSpec((tm, state_dim), lambda i: (i, 0)),      # x batch-tiled
            pl.BlockSpec((state_dim, h1_dim), lambda i: (0, 0)),  # weights pinned
            pl.BlockSpec((1, h1_dim), lambda i: (0, 0)),
            pl.BlockSpec((h1_dim, h2_dim), lambda i: (0, 0)),
            pl.BlockSpec((1, h2_dim), lambda i: (0, 0)),
            pl.BlockSpec((h2_dim, na_pad), lambda i: (0, 0)),
            pl.BlockSpec((1, na_pad), lambda i: (0, 0)),
        ],
        out_specs=pl.BlockSpec((tm, na_pad), lambda i: (i, 0)),
        compiler_params=pltpu.CompilerParams(
            dimension_semantics=("parallel",)),
        cost_estimate=pl.CostEstimate(flops=flops,
                                      transcendentals=transcendentals,
                                      bytes_accessed=bytes_accessed),
    )(x, w1b, b1f, w2b, b2f, w3p, b3p)

    if trim_output:
        return out[:batch, :n_actions]
    return out  # padded lane-dense buffer; slice lazily at the consumer


def init_params(key, state_dim, n_actions, hidden_dims_1=256, hidden_dims_2=256):
    """Deterministic, PyTorch-Linear-style (uniform +/- 1/sqrt(fan_in)) init.

    Weights stored as (in_features, out_features); biases as (1, out_features).
    """
    ks = jax.random.split(key, 6)

    def linear(kw, kb, fan_in, fan_out):
        bound = 1.0 / jnp.sqrt(jnp.float32(fan_in))
        w = jax.random.uniform(kw, (fan_in, fan_out), jnp.float32, -bound, bound)
        b = jax.random.uniform(kb, (1, fan_out), jnp.float32, -bound, bound)
        return w, b

    w1, b1 = linear(ks[0], ks[1], state_dim, hidden_dims_1)
    w2, b2 = linear(ks[2], ks[3], hidden_dims_1, hidden_dims_2)
    w3, b3 = linear(ks[4], ks[5], hidden_dims_2, n_actions)
    return (w1, b1, w2, b2, w3, b3)


def _reference_forward(state, params):
    """Pure-JAX f32 reference for correctness checking."""
    w1, b1, w2, b2, w3, b3 = params
    h1 = jnp.maximum(state @ w1 + b1, 0.0)
    h2 = jnp.maximum(h1 @ w2 + b2, 0.0)
    logits = h2 @ w3 + b3
    return jax.nn.softmax(logits, axis=-1)


if __name__ == "__main__":
    # Small, deterministic example. batch=48 exercises a multi-step grid
    # (grid_m=2, tm=32) and a zero-padded last tile.
    batch = 48
    state_dim = 32
    n_actions = 6
    hidden_1 = 256
    hidden_2 = 256

    key = jax.random.PRNGKey(0)
    k_params, k_state = jax.random.split(key)

    params = init_params(k_params, state_dim, n_actions, hidden_1, hidden_2)
    state = jax.random.normal(k_state, (batch, state_dim), dtype=jnp.float32)

    probs = actor_forward(state, params)
    probs = jax.block_until_ready(probs)

    # Sanity: valid categorical distribution (rows sum to 1, non-negative).
    assert probs.shape == (batch, n_actions)
    assert bool(jnp.all(probs >= 0.0))
    assert bool(jnp.allclose(jnp.sum(probs, axis=-1), 1.0, atol=1e-3))

    # Cross-check against an f32 pure-JAX reference (bf16 matmul tolerance).
    ref = _reference_forward(state, params)
    assert bool(jnp.allclose(probs, ref, atol=5e-2))

    # TODO(synk): torch.distributions.Categorical is a host-side distribution
    # wrapper; the kernel returns the probability vector that parameterizes it
    # (sample at the consumer with jax.random.categorical(key, jnp.log(probs))).

    print("KERNEL_OK")
</pallas_src>

<mosaic_0001>
module attributes {stable_mosaic.version = 11 : i64} {
  func.func @_actor_kernel(%arg0: i32, %arg1: memref<32x32xbf16, #tpu.memory_space<vmem>>, %arg2: memref<32x256xbf16, #tpu.memory_space<vmem>>, %arg3: memref<1x256xf32, #tpu.memory_space<vmem>>, %arg4: memref<256x256xbf16, #tpu.memory_space<vmem>>, %arg5: memref<1x256xf32, #tpu.memory_space<vmem>>, %arg6: memref<256x128xbf16, #tpu.memory_space<vmem>>, %arg7: memref<1x128xf32, #tpu.memory_space<vmem>>, %arg8: memref<32x128xf32, #tpu.memory_space<vmem>>) attributes {dimension_semantics = [#tpu.dimension_semantics<parallel>], iteration_bounds = array<i64: 2>, scalar_prefetch = 0 : i64, scratch_operands = 0 : i64, tpu.core_type = #tpu.core_type<tc>, window_params = [{transform_indices = @transform_0, window_bounds = array<i64: 32, 32>}, {pipeline_mode = #tpu.pipeline_mode<synchronous>, transform_indices = @transform_1, window_bounds = array<i64: 32, 256>}, {pipeline_mode = #tpu.pipeline_mode<synchronous>, transform_indices = @transform_2, window_bounds = array<i64: 1, 256>}, {pipeline_mode = #tpu.pipeline_mode<synchronous>, transform_indices = @transform_3, window_bounds = array<i64: 256, 256>}, {pipeline_mode = #tpu.pipeline_mode<synchronous>, transform_indices = @transform_4, window_bounds = array<i64: 1, 256>}, {pipeline_mode = #tpu.pipeline_mode<synchronous>, transform_indices = @transform_5, window_bounds = array<i64: 256, 128>}, {pipeline_mode = #tpu.pipeline_mode<synchronous>, transform_indices = @transform_6, window_bounds = array<i64: 1, 128>}, {transform_indices = @transform_7, window_bounds = array<i64: 32, 128>}]} {
    %c0 = arith.constant 0 : index
    %c0_0 = arith.constant 0 : index
    %0 = vector.load %arg1[%c0, %c0_0] : memref<32x32xbf16, #tpu.memory_space<vmem>>, vector<32x32xbf16>
    %c0_1 = arith.constant 0 : index
    %c0_2 = arith.constant 0 : index
    %1 = vector.load %arg2[%c0_1, %c0_2] : memref<32x256xbf16, #tpu.memory_space<vmem>>, vector<32x256xbf16>
    %cst = arith.constant dense<0.000000e+00> : vector<32x256xf32>
    %2 = tpu.matmul %0, %1, %cst {dimension_numbers = #tpu.dot_dimension_numbers<[1], [0], [0], [1], [0, 0, 1, 1], [], []>} : vector<32x32xbf16>, vector<32x256xbf16>, vector<32x256xf32> -> vector<32x256xf32>
    %c0_3 = arith.constant 0 : index
    %c0_4 = arith.constant 0 : index
    %3 = vector.load %arg3[%c0_3, %c0_4] : memref<1x256xf32, #tpu.memory_space<vmem>>, vector<1x256xf32>
    %4 = vector.broadcast %3 : vector<1x256xf32> to vector<32x256xf32>
    %5 = arith.addf %2, %4 : vector<32x256xf32>
    %cst_5 = arith.constant 0.000000e+00 : f32
    %6 = vector.broadcast %cst_5 : f32 to vector<32x256xf32>
    %7 = arith.maximumf %5, %6 : vector<32x256xf32>
    %8 = arith.truncf %7 : vector<32x256xf32> to vector<32x256xbf16>
    %c0_6 = arith.constant 0 : index
    %c0_7 = arith.constant 0 : index
    %9 = vector.load %arg4[%c0_6, %c0_7] : memref<256x256xbf16, #tpu.memory_space<vmem>>, vector<256x256xbf16>
    %cst_8 = arith.constant dense<0.000000e+00> : vector<32x256xf32>
    %10 = tpu.matmul %8, %9, %cst_8 {dimension_numbers = #tpu.dot_dimension_numbers<[1], [0], [0], [1], [0, 0, 1, 1], [], []>} : vector<32x256xbf16>, vector<256x256xbf16>, vector<32x256xf32> -> vector<32x256xf32>
    %c0_9 = arith.constant 0 : index
    %c0_10 = arith.constant 0 : index
    %11 = vector.load %arg5[%c0_9, %c0_10] : memref<1x256xf32, #tpu.memory_space<vmem>>, vector<1x256xf32>
    %12 = vector.broadcast %11 : vector<1x256xf32> to vector<32x256xf32>
    %13 = arith.addf %10, %12 : vector<32x256xf32>
    %cst_11 = arith.constant 0.000000e+00 : f32
    %14 = vector.broadcast %cst_11 : f32 to vector<32x256xf32>
    %15 = arith.maximumf %13, %14 : vector<32x256xf32>
    %16 = arith.truncf %15 : vector<32x256xf32> to vector<32x256xbf16>
    %c0_12 = arith.constant 0 : index
    %c0_13 = arith.constant 0 : index
    %17 = vector.load %arg6[%c0_12, %c0_13] : memref<256x128xbf16, #tpu.memory_space<vmem>>, vector<256x128xbf16>
    %cst_14 = arith.constant dense<0.000000e+00> : vector<32x128xf32>
    %18 = tpu.matmul %16, %17, %cst_14 {dimension_numbers = #tpu.dot_dimension_numbers<[1], [0], [0], [1], [0, 0, 1, 1], [], []>} : vector<32x256xbf16>, vector<256x128xbf16>, vector<32x128xf32> -> vector<32x128xf32>
    %c0_15 = arith.constant 0 : index
    %c0_16 = arith.constant 0 : index
    %19 = vector.load %arg7[%c0_15, %c0_16] : memref<1x128xf32, #tpu.memory_space<vmem>>, vector<1x128xf32>
    %20 = vector.broadcast %19 : vector<1x128xf32> to vector<32x128xf32>
    %21 = arith.addf %18, %20 : vector<32x128xf32>
    %cst_17 = arith.constant dense<0xFF800000> : vector<32xf32>
    %22 = vector.multi_reduction <maximumf>, %21, %cst_17 [1] : vector<32x128xf32> to vector<32xf32>
    %23 = vector.shape_cast %22 : vector<32xf32> to vector<32x1xf32>
    %24 = vector.broadcast %23 : vector<32x1xf32> to vector<32x128xf32>
    %25 = arith.subf %21, %24 : vector<32x128xf32>
    %26 = math.exp %25 : vector<32x128xf32>
    %cst_18 = arith.constant dense<0.000000e+00> : vector<32xf32>
    %27 = vector.multi_reduction <add>, %26, %cst_18 [1] : vector<32x128xf32> to vector<32xf32>
    %28 = vector.shape_cast %27 : vector<32xf32> to vector<32x1xf32>
    %29 = vector.broadcast %28 : vector<32x1xf32> to vector<32x128xf32>
    %30 = arith.divf %26, %29 : vector<32x128xf32>
    %c0_19 = arith.constant 0 : index
    %c0_20 = arith.constant 0 : index
    %31 = vector.load %arg8[%c0_19, %c0_20] : memref<32x128xf32, #tpu.memory_space<vmem>>, vector<32x128xf32>
    tpu.vector_store %arg8[%c0_19, %c0_20], %30 {strides = array<i32>} : memref<32x128xf32, #tpu.memory_space<vmem>>, vector<32x128xf32>,
    return
  }
  func.func @transform_0(%arg0: i32) -> (i32, i32) {
    %c0_i32 = arith.constant 0 : i32
    %c0_i32_0 = arith.constant 0 : i32
    return %arg0, %c0_i32 : i32, i32
  }
  func.func @transform_1(%arg0: i32) -> (i32, i32) {
    %c0_i32 = arith.constant 0 : i32
    %c0_i32_0 = arith.constant 0 : i32
    %c0_i32_1 = arith.constant 0 : i32
    return %c0_i32, %c0_i32_0 : i32, i32
  }
  func.func @transform_2(%arg0: i32) -> (i32, i32) {
    %c0_i32 = arith.constant 0 : i32
    %c0_i32_0 = arith.constant 0 : i32
    %c0_i32_1 = arith.constant 0 : i32
    return %c0_i32, %c0_i32_0 : i32, i32
  }
  func.func @transform_3(%arg0: i32) -> (i32, i32) {
    %c0_i32 = arith.constant 0 : i32
    %c0_i32_0 = arith.constant 0 : i32
    %c0_i32_1 = arith.constant 0 : i32
    return %c0_i32, %c0_i32_0 : i32, i32
  }
  func.func @transform_4(%arg0: i32) -> (i32, i32) {
    %c0_i32 = arith.constant 0 : i32
    %c0_i32_0 = arith.constant 0 : i32
    %c0_i32_1 = arith.constant 0 : i32
    return %c0_i32, %c0_i32_0 : i32, i32
  }
  func.func @transform_5(%arg0: i32) -> (i32, i32) {
    %c0_i32 = arith.constant 0 : i32
    %c0_i32_0 = arith.constant 0 : i32
    %c0_i32_1 = arith.constant 0 : i32
    return %c0_i32, %c0_i32_0 : i32, i32
  }
  func.func @transform_6(%arg0: i32) -> (i32, i32) {
    %c0_i32 = arith.constant 0 : i32
    %c0_i32_0 = arith.constant 0 : i32
    %c0_i32_1 = arith.constant 0 : i32
    return %c0_i32, %c0_i32_0 : i32, i32
  }
  func.func @transform_7(%arg0: i32) -> (i32, i32) {
    %c0_i32 = arith.constant 0 : i32
    %c0_i32_0 = arith.constant 0 : i32
    return %arg0, %c0_i32 : i32, i32
  }
}

</mosaic_0001>

<llo_original>
// kernel: tpu_custom_call.1
$region0: #{tpu_custom_call.1}
  #allocation0 [shape = 'u32[]', space=smem, size = 0x4, offset = 0x4, fixed_abs, tag = 'smem constant byte address 0x4 - core index']
  #allocation1 [shape = 'u32[144,128]{1,0:T(1,128)}', space=vmem, size = 0x12000, scoped, tag = 'internal scratch']
  %s0 = inlined_call_operand.vmem [shape: bf16[64,32], index: 0, kind: input, shape index: {}]
  %s1 = inlined_call_operand.vmem [shape: bf16[32,256], index: 1, kind: input, shape index: {}]
  %s2 = inlined_call_operand.vmem [shape: f32[1,256], index: 2, kind: input, shape index: {}]
  %s3 = inlined_call_operand.hbm [shape: bf16[256,256], index: 3, kind: input, shape index: {}]
  %s4 = inlined_call_operand.vmem [shape: f32[1,256], index: 4, kind: input, shape index: {}]
  %s5 = inlined_call_operand.hbm [shape: bf16[256,128], index: 5, kind: input, shape index: {}]
  %s6 = inlined_call_operand.vmem [shape: f32[1,128], index: 6, kind: input, shape index: {}]
  %s7 = inlined_call_operand.hbm [shape: f32[64,128], index: 7, kind: output, shape index: {}]
  %s8 = sld [smem:[#allocation0]]
  $region69: #{tpu_custom_call.1} parent=0
    _
  %s10 = ssub.s32 1, %s8
  %s11 = scalar_select 0, %s10, %s8
  $region1: #{tpu_custom_call.1} parent=0
    #allocation2 [shape = 'u8[131072]{0}', space=vmem, size = 0x20000, scoped, tag = 'input window, operand 3, single buffered']
    #allocation3 [shape = 's32[2]{0}', space=sflag, size = 0x8, scoped, tag = 'scoped memory for tpu_custom_call.1']
    #allocation4 [shape = 's32[2]{0}', space=sflag, size = 0x8, scoped, tag = 'scoped memory for tpu_custom_call.1']
    #allocation5 [shape = 'u8[65536]{0}', space=vmem, size = 0x10000, scoped, tag = 'input window, operand 5, single buffered']
    #allocation6 [shape = 's32[1]{0}', space=sflag, size = 0x4, scoped, tag = 'scoped memory for tpu_custom_call.1']
    #allocation7 [shape = 'u8[32768]{0}', space=vmem, size = 0x8000, scoped, tag = 'output window, operand 0']
    %12 = vsyncpa [#allocation3], 0
    %13 = vsyncpa [#allocation6], 0
    %14 = vsyncpa [#allocation4], 0
    %s15 = scalar_lea.sflag [#allocation4], 1
    %16 = vsyncpa %s15, 0
    loop: start=0, step=1, limit=4
    $region2: #{tpu_custom_call.1} parent=1 // loop_pre_header
      _
    $region3: #{tpu_custom_call.1} parent=1 // loop_header
      %s18 = sphi 0, %s22
      %p19 = scmp.ge.s32.totalorder %s18, 4
      %s28 = sphi 0, %s30
      %s31 = sphi 0, %s28
      %s32 = sphi 0, %s31
      %s48 = sphi 0, %s32
      %s52 = sphi 0, %s52
      %s54 = sphi 0, %s52
      %s55 = sphi 0, %s54
      %s69 = sphi 0, %s55
      %s73 = sphi 0, %s73
      %s75 = sphi 0, %s73
      %s76 = sphi 0, %s75
      %s90 = sphi 0, %s76
      %s94 = sphi 0, %s94
      %s96 = sphi 0, %s94
      %s97 = sphi 0, %s96
      %s111 = sphi 0, %s97
      %s115 = sphi 0, %s115
      %s117 = sphi 0, %s115
      %s118 = sphi 0, %s117
      %s132 = sphi 0, %s118
      %s136 = sphi 0, %s136
      %s138 = sphi 0, %s136
      %s139 = sphi 0, %s138
      %s153 = sphi 0, %s139
      %s157 = sphi 0, %s157
      %s159 = sphi 0, %s157
      %s160 = sphi 0, %s159
      %s174 = sphi 0, %s160
      %s180 = sphi 0, %s182
      %s183 = sphi 0, %s180
      %s184 = sphi 0, %s183
      %s200 = sphi 0, %s184
    $region4: #{tpu_custom_call.1} parent=1 // loop_header_branch
      %21 = sbr.rel (%p19) target = $region8
    $region5: #{tpu_custom_call.1} parent=1 // loop_body
      %s23 = ssub.s32 %s18, 1
      %s24 = ssub.s32 %s18, 2
      %s25 = sadd.s32 %s18, 1
      %s26 = ssub.s32 %s18, %s25
      %p27 = scmp.eq.s32.totalorder %s26, 0
      %s29 = sadd.s32 %s28, 1
      %s30 = scalar_select %p27, %s28, %s29
      %p33 = pneg %p27
      %p34 = scmp.eq.s32.totalorder %s18, 1
      %p35 = por %p33, %p34
      %p36 = scmp.ne.s32.totalorder %s28, %s31
      %p37 = scmp.eq.s32.totalorder %s18, 0
      %p38 = por %p36, %p37
      %p39 = scmp.ne.s32.totalorder %s28, %s31
      %p40 = scmp.eq.s32.totalorder %s23, 1
      %p41 = por %p39, %p40
      %p42 = scmp.ne.s32.totalorder %s31, %s32
      %p43 = scmp.eq.s32.totalorder %s23, 0
      %p44 = por %p42, %p43
      %p45 = scmp.ne.s32.totalorder %s31, %s32
      %p46 = scmp.eq.s32.totalorder %s24, 1
      %p47 = por %p45, %p46
      %p49 = scmp.ne.s32.totalorder %s32, %s48
      %p50 = scmp.eq.s32.totalorder %s24, 0
      %p51 = por %p49, %p50
      %s53 = sadd.s32 %s52, 1
      %p56 = scmp.eq.s32.totalorder %s18, 1
      %p57 = scmp.ne.s32.totalorder %s52, %s54
      %p58 = scmp.eq.s32.totalorder %s18, 0
      %p59 = por %p57, %p58
      %p60 = scmp.ne.s32.totalorder %s52, %s54
      %p61 = scmp.eq.s32.totalorder %s23, 1
      %p62 = por %p60, %p61
      %p63 = scmp.ne.s32.totalorder %s54, %s55
      %p64 = scmp.eq.s32.totalorder %s23, 0
      %p65 = por %p63, %p64
      %p66 = scmp.ne.s32.totalorder %s54, %s55
      %p67 = scmp.eq.s32.totalorder %s24, 1
      %p68 = por %p66, %p67
      %p70 = scmp.ne.s32.totalorder %s55, %s69
      %p71 = scmp.eq.s32.totalorder %s24, 0
      %p72 = por %p70, %p71
      %s74 = sadd.s32 %s73, 1
      %p77 = scmp.eq.s32.totalorder %s18, 1
      %p78 = scmp.ne.s32.totalorder %s73, %s75
      %p79 = scmp.eq.s32.totalorder %s18, 0
      %p80 = por %p78, %p79
      %p81 = scmp.ne.s32.totalorder %s73, %s75
      %p82 = scmp.eq.s32.totalorder %s23, 1
      %p83 = por %p81, %p82
      %p84 = scmp.ne.s32.totalorder %s75, %s76
      %p85 = scmp.eq.s32.totalorder %s23, 0
      %p86 = por %p84, %p85
      %p87 = scmp.ne.s32.totalorder %s75, %s76
      %p88 = scmp.eq.s32.totalorder %s24, 1
      %p89 = por %p87, %p88
      %p91 = scmp.ne.s32.totalorder %s76, %s90
      %p92 = scmp.eq.s32.totalorder %s24, 0
      %p93 = por %p91, %p92
      %s95 = sadd.s32 %s94, 1
      %p98 = scmp.eq.s32.totalorder %s18, 1
      %p99 = scmp.ne.s32.totalorder %s94, %s96
      %p100 = scmp.eq.s32.totalorder %s18, 0
      %p101 = por %p99, %p100
      %p102 = scmp.ne.s32.totalorder %s94, %s96
      %p103 = scmp.eq.s32.totalorder %s23, 1
      %p104 = por %p102, %p103
      %p105 = scmp.ne.s32.totalorder %s96, %s97
      %p106 = scmp.eq.s32.totalorder %s23, 0
      %p107 = por %p105, %p106
      %p108 = scmp.ne.s32.totalorder %s96, %s97
      %p109 = scmp.eq.s32.totalorder %s24, 1
      %p110 = por %p108, %p109
      %p112 = scmp.ne.s32.totalorder %s97, %s111
      %p113 = scmp.eq.s32.totalorder %s24, 0
      %p114 = por %p112, %p113
      %s116 = sadd.s32 %s115, 1
      %p119 = scmp.eq.s32.totalorder %s18, 1
      %p120 = scmp.ne.s32.totalorder %s115, %s117
      %p121 = scmp.eq.s32.totalorder %s18, 0
      %p122 = por %p120, %p121
      %p123 = scmp.ne.s32.totalorder %s115, %s117
      %p124 = scmp.eq.s32.totalorder %s23, 1
      %p125 = por %p123, %p124
      %p126 = scmp.ne.s32.totalorder %s117, %s118
      %p127 = scmp.eq.s32.totalorder %s23, 0
      %p128 = por %p126, %p127
      %p129 = scmp.ne.s32.totalorder %s117, %s118
      %p130 = scmp.eq.s32.totalorder %s24, 1
      %p131 = por %p129, %p130
      %p133 = scmp.ne.s32.totalorder %s118, %s132
      %p134 = scmp.eq.s32.totalorder %s24, 0
      %p135 = por %p133, %p134
      %s137 = sadd.s32 %s136, 1
      %p140 = scmp.eq.s32.totalorder %s18, 1
      %p141 = scmp.ne.s32.totalorder %s136, %s138
      %p142 = scmp.eq.s32.totalorder %s18, 0
      %p143 = por %p141, %p142
      %p144 = scmp.ne.s32.totalorder %s136, %s138
      %p145 = scmp.eq.s32.totalorder %s23, 1
      %p146 = por %p144, %p145
      %p147 = scmp.ne.s32.totalorder %s138, %s139
      %p148 = scmp.eq.s32.totalorder %s23, 0
      %p149 = por %p147, %p148
      %p150 = scmp.ne.s32.totalorder %s138, %s139
      %p151 = scmp.eq.s32.totalorder %s24, 1
      %p152 = por %p150, %p151
      %p154 = scmp.ne.s32.totalorder %s139, %s153
      %p155 = scmp.eq.s32.totalorder %s24, 0
      %p156 = por %p154, %p155
      %s158 = sadd.s32 %s157, 1
      %p161 = scmp.eq.s32.totalorder %s18, 1
      %p162 = scmp.ne.s32.totalorder %s157, %s159
      %p163 = scmp.eq.s32.totalorder %s18, 0
      %p164 = por %p162, %p163
      %p165 = scmp.ne.s32.totalorder %s157, %s159
      %p166 = scmp.eq.s32.totalorder %s23, 1
      %p167 = por %p165, %p166
      %p168 = scmp.ne.s32.totalorder %s159, %s160
      %p169 = scmp.eq.s32.totalorder %s23, 0
      %p170 = por %p168, %p169
      %p171 = scmp.ne.s32.totalorder %s159, %s160
      %p172 = scmp.eq.s32.totalorder %s24, 1
      %p173 = por %p171, %p172
      %p175 = scmp.ne.s32.totalorder %s160, %s174
      %p176 = scmp.eq.s32.totalorder %s24, 0
      %p177 = por %p175, %p176
      %s178 = ssub.s32 %s18, %s25
      %p179 = scmp.eq.s32.totalorder %s178, 0
      %s181 = sadd.s32 %s180, 1
      %s182 = scalar_select %p179, %s180, %s181
      %p185 = pneg %p179
      %p186 = scmp.eq.s32.totalorder %s18, 1
      %p187 = por %p185, %p186
      %p188 = scmp.ne.s32.totalorder %s180, %s183
      %p189 = scmp.eq.s32.totalorder %s18, 0
      %p190 = por %p188, %p189
      %p191 = scmp.ne.s32.totalorder %s180, %s183
      %p192 = scmp.eq.s32.totalorder %s23, 1
      %p193 = por %p191, %p192
      %p194 = scmp.ne.s32.totalorder %s183, %s184
      %p195 = scmp.eq.s32.totalorder %s23, 0
      %p196 = por %p194, %p195
      %p197 = scmp.ne.s32.totalorder %s183, %s184
      %p198 = scmp.eq.s32.totalorder %s24, 1
      %p199 = por %p197, %p198
      %p201 = scmp.ne.s32.totalorder %s184, %s200
      %p202 = scmp.eq.s32.totalorder %s24, 0
      %p203 = por %p201, %p202
      %p204 = scmp.le.s32.totalorder 1, %s18
      %p205 = scmp.lt.s32.totalorder %s18, 3
      %p206 = pnand %p204, %p205
      %p207 = pneg %p206
      // Predicated region
      $region9: #{tpu_custom_call.1} parent=5 // pred_check
        _
      $region10: #{tpu_custom_call.1} parent=5 // pred_check_branch
        %209 = sbr.rel (%p206) target = $region12
      $region11: #{tpu_custom_call.1} parent=5 // pred_region
        %s210 = ssub.s32 %s18, 1
        // Predicated region
        $region13: #{tpu_custom_call.1} parent=11 // pred_check
          %p211 = pneg %p65
        $region14: #{tpu_custom_call.1} parent=11 // pred_check_branch
          %213 = sbr.rel (%p211) target = $region16
        $region15: #{tpu_custom_call.1} parent=11 // pred_region
          _
        $region16: #{tpu_custom_call.1} parent=11 // pred_fallthru
          _
        // Predicated region
        $region17: #{tpu_custom_call.1} parent=11 // pred_check
          %p214 = pneg %p86
        $region18: #{tpu_custom_call.1} parent=11 // pred_check_branch
          %216 = sbr.rel (%p214) target = $region20
        $region19: #{tpu_custom_call.1} parent=11 // pred_region
          _
        $region20: #{tpu_custom_call.1} parent=11 // pred_fallthru
          _
        // Predicated region
        $region21: #{tpu_custom_call.1} parent=11 // pred_check
          %p217 = pneg %p107
        $region22: #{tpu_custom_call.1} parent=11 // pred_check_branch
          %219 = sbr.rel (%p217) target = $region24
        $region23: #{tpu_custom_call.1} parent=11 // pred_region
          %s221 = ssub.s32 4096, 4096
          %222 = vsyncadd [#allocation3], %s221
          %s223 = sshll.u32 [#allocation2], 4
          %s224 = int_to_ptr.vmem [resolvable:$true] %s223
          %229 = dma.hbm_to_vmem [thread:$0]  %s3, 4096, %s224, [#allocation3], 128, 128, 8
        $region24: #{tpu_custom_call.1} parent=11 // pred_fallthru
          _
        // Predicated region
        $region25: #{tpu_custom_call.1} parent=11 // pred_check
          %p230 = pneg %p128
        $region26: #{tpu_custom_call.1} parent=11 // pred_check_branch
          %232 = sbr.rel (%p230) target = $region28
        $region27: #{tpu_custom_call.1} parent=11 // pred_region
          _
        $region28: #{tpu_custom_call.1} parent=11 // pred_fallthru
          _
        // Predicated region
        $region29: #{tpu_custom_call.1} parent=11 // pred_check
          %p233 = pneg %p149
        $region30: #{tpu_custom_call.1} parent=11 // pred_check_branch
          %235 = sbr.rel (%p233) target = $region32
        $region31: #{tpu_custom_call.1} parent=11 // pred_region
          %s237 = ssub.s32 2048, 2048
          %238 = vsyncadd [#allocation6], %s237
          %s239 = sshll.u32 [#allocation5], 4
          %s240 = int_to_ptr.vmem [resolvable:$true] %s239
          %245 = dma.hbm_to_vmem [thread:$0]  %s5, 2048, %s240, [#allocation6], 64, 64, 4
        $region32: #{tpu_custom_call.1} parent=11 // pred_fallthru
          _
        // Predicated region
        $region33: #{tpu_custom_call.1} parent=11 // pred_check
          %p246 = pneg %p170
        $region34: #{tpu_custom_call.1} parent=11 // pred_check_branch
          %248 = sbr.rel (%p246) target = $region36
        $region35: #{tpu_custom_call.1} parent=11 // pred_region
          _
        $region36: #{tpu_custom_call.1} parent=11 // pred_fallthru
          _
      $region12: #{tpu_custom_call.1} parent=5 // pred_fallthru
        _
      %p249 = scmp.lt.s32.totalorder %s18, 2
      // Predicated region
      $region37: #{tpu_custom_call.1} parent=5 // pred_check
        %p250 = pneg %p249
      $region38: #{tpu_custom_call.1} parent=5 // pred_check_branch
        %252 = sbr.rel (%p250) target = $region40
      $region39: #{tpu_custom_call.1} parent=5 // pred_region
        // Predicated region
        $region41: #{tpu_custom_call.1} parent=39 // pred_check
          %p253 = pneg %p38
        $region42: #{tpu_custom_call.1} parent=39 // pred_check_branch
          %255 = sbr.rel (%p253) target = $region44
        $region43: #{tpu_custom_call.1} parent=39 // pred_region
          %s256 = smul.u32 4, %s18
          %p257 = scmp.lt.s32.totalorder %s256, 7
          %s258 = scalar_select %p257, %s256, 7
          %s259 = smul.addr %s258, 4
          %s260 = scalar_lea.vmem %s0, %s259
          %s261 = smul.u32 4, %s18
        $region44: #{tpu_custom_call.1} parent=39 // pred_fallthru
          _
      $region40: #{tpu_custom_call.1} parent=5 // pred_fallthru
        _
      %p262 = scmp.le.s32.totalorder 1, %s18
      %p263 = scmp.lt.s32.totalorder %s18, 3
      %p264 = pnand %p262, %p263
      %p265 = pneg %p264
      // Predicated region
      $region45: #{tpu_custom_call.1} parent=5 // pred_check
        _
      $region46: #{tpu_custom_call.1} parent=5 // pred_check_branch
        %267 = sbr.rel (%p264) target = $region48
      $region47: #{tpu_custom_call.1} parent=5 // pred_region
        %s268 = ssub.s32 %s18, 1
        // Predicated region
        $region49: #{tpu_custom_call.1} parent=47 // pred_check
          %p269 = pneg %p107
        $region50: #{tpu_custom_call.1} parent=47 // pred_check_branch
          %271 = sbr.rel (%p269) target = $region52
        $region51: #{tpu_custom_call.1} parent=47 // pred_region
          %272 = dma.done [#allocation3], 4096
        $region52: #{tpu_custom_call.1} parent=47 // pred_fallthru
          _
        // Predicated region
        $region53: #{tpu_custom_call.1} parent=47 // pred_check
          %p273 = pneg %p149
        $region54: #{tpu_custom_call.1} parent=47 // pred_check_branch
          %275 = sbr.rel (%p273) target = $region56
        $region55: #{tpu_custom_call.1} parent=47 // pred_region
          %276 = dma.done [#allocation6], 2048
        $region56: #{tpu_custom_call.1} parent=47 // pred_fallthru
          _
        %s277 = smul.u32 4, %s23
        %p278 = scmp.lt.s32.totalorder %s277, 7
        %s279 = scalar_select %p278, %s277, 7
        %s280 = smul.addr %s279, 4
        %s281 = scalar_lea.vmem %s0, %s280
        %p282 = pneg %p44
        %p283 = pneg %p41
        %p284 = pneg %p65
        %p285 = pneg %p62
        %p286 = pneg %p86
        %p287 = pneg %p83
        %p288 = pneg %p107
        %p289 = pneg %p104
        %p290 = pneg %p128
        %p291 = pneg %p125
        %p292 = pneg %p149
        %p293 = pneg %p146
        %p294 = pneg %p170
        %p295 = pneg %p167
        %p296 = pneg %p196
        %p297 = pneg %p193
        %s298 = sand.u32 %s183, 1
        %s299 = scalar_lea.sflag [#allocation4], %s298
        %s300 = sand.u32 %s183, 1
        %s301 = smul.addr %s300, 32
        %s302 = scalar_lea.vmem [#allocation7], %s301
        %s303 = smul.u32 4, %s23
        %p304 = scmp.lt.s32.totalorder %s303, 7
        %s305 = scalar_select %p304, %s303, 7
        %s306 = smul.addr %s305, 4
        %s307 = scalar_lea.vmem %s0, %s306
        %s308 = smul.u32 4, %s23
        %s309 = smul.u32 4, %s23
        %v311 = vld [vmem:[%s307] sm:$0xf]
        %v312 = vld [vmem:[%s307 + $0x4] sm:$0xf]
        %v313 = vld [vmem:[%s307 + $0x8] sm:$0xf]
        %v314 = vld [vmem:[%s307 + $0xc] sm:$0xf]
        %v315 = vld [vmem:[%s1] sm:$0xff]
        %v316 = vld [vmem:[%s1 + $0x8] sm:$0xff]
        %v317 = vld [vmem:[%s1 + $0x10] sm:$0xff]
        %v318 = vld [vmem:[%s1 + $0x18] sm:$0xff]
        %v319 = vld [vmem:[%s2] sm:$0x3]
        %v321 = vlaneseq
        %v322 = vshrl.u32 %v321, 7
        %v323 = vsub.s32 0, %v322
        %v324 = vrot.slane %v319, %v323
        %v325 = vlaneseq
        %v326 = vshrl.u32 %v325, 7
        %v327 = vsub.s32 1, %v326
        %v328 = vrot.slane %v319, %v327
        %v335 = vunpack.c.l.b16 %v311
        %v336 = vunpack.c.l.b16 %v312
        %v337 = vunpack.c.l.b16 %v313
        %v338 = vunpack.c.l.b16 %v314
        %v339 = vpack.c.b16 %v336, %v335
        %v340 = vpack.c.b16 %v338, %v337
        %v345 = vunpack.c.l.b16 %v315
        %v346 = vunpack.c.h.b16 %v315
        %v347 = vunpack.c.l.b16 %v316
        %v348 = vunpack.c.h.b16 %v316
        %v349 = vunpack.c.l.b16 %v317
        %v350 = vunpack.c.h.b16 %v317
        %v351 = vunpack.c.l.b16 %v318
        %v352 = vunpack.c.h.b16 %v318
        %v353 = vpack.c.b16 %v347, %v345
        %v354 = vpack.c.b16 %v348, %v346
        %v355 = vpack.c.b16 %v351, %v349
        %v356 = vpack.c.b16 %v352, %v350
        %vm361 = vcmask 261120
        %v363 = vsel %vm361, %v339, 0
        %v366 = vsel %vm361, %v340, 0
        %368 = vmatprep.subr.bf16.mxu0 %v354
        %369 = vmatpush1.bf16.msra.mxu0 %v353
        %370 = vmatprep.subr.bf16.mxu0 %v356
        %371 = vmatpush1.bf16.msra.mxu0 %v355
        %372 = vmatprep.subr.bf16.mxu0 0
        %373 = vmatpush1.bf16.msra.mxu0 0
        %374 = vmatprep.subr.bf16.mxu0 0
        %375 = vmatpush1.bf16.msra.mxu0 0
        %376 = vmatprep.subr.bf16.mxu0 0
        %377 = vmatpush1.bf16.msra.mxu0 0
        %378 = vmatprep.subr.bf16.mxu0 0
        %379 = vmatpush1.bf16.msra.mxu0 0
        %380 = vmatprep.subr.bf16.mxu0 0
        %381 = vmatpush1.bf16.msra.mxu0 0
        %382 = vmatprep.subr.bf16.mxu0 0
        %383 = vmatpush1.bf16.msra.mxu0 0
        %384 = vmatprep.subr.bf16.mxu0 0
        %385 = vmatpush1.bf16.msra.mxu0 0
        %386 = vmatprep.subr.bf16.mxu0 0
        %387 = vmatpush1.bf16.msra.mxu0 0
        %388 = vmatprep.subr.bf16.mxu0 0
        %389 = vmatpush1.bf16.msra.mxu0 0
        %390 = vmatprep.subr.bf16.mxu0 0
        %391 = vmatpush1.bf16.msra.mxu0 0
        %392 = vmatprep.subr.bf16.mxu0 0
        %393 = vmatpush1.bf16.msra.mxu0 0
        %394 = vmatprep.subr.bf16.mxu0 0
        %395 = vmatpush1.bf16.msra.mxu0 0
        %396 = vmatprep.subr.bf16.mxu0 0
        %397 = vmatpush1.bf16.msra.mxu0 0
        %398 = vmatprep.subr.bf16.mxu0 0
        %399 = vmatpush1.bf16.msra.mxu0 0
        %400 = vmatprep.mubr.bf16.mxu0 0
        %401 = vmatmul.mubr.bf16.gmra.mrb[0].mxu0 %v363
        %v402 = vpop.f32.mrb[0].mxu0
        %v403 = vadd.f32 %v324, %v402
        %v404 = vpop.f32.mrb[0].mxu0
        %v405 = vadd.f32 %v328, %v404
        %v406 = vpop.f32.mrb[0].mxu0
        %v407 = vadd.f32 %v324, %v406
        %v408 = vpop.f32.mrb[0].mxu0
        %v409 = vadd.f32 %v328, %v408
        %410 = vmatprep.mubr.bf16.mxu0 0
        %411 = vmatmul.mubr.bf16.gmra.mrb[0].mxu0 %v366
        %v412 = vpop.f32.mrb[0].mxu0
        %v413 = vadd.f32 %v324, %v412
        %v414 = vpop.f32.mrb[0].mxu0
        %v415 = vadd.f32 %v328, %v414
        %v416 = vpop.f32.mrb[0].mxu0
        %v417 = vadd.f32 %v324, %v416
        %v418 = vpop.f32.mrb[0].mxu0
        %v419 = vadd.f32 %v328, %v418
        %420 = vdwg.mxu0
        %v421 = vmax.f32 %v403, 0.0
        %v422 = vmax.f32 %v405, 0.0
        %v423 = vmax.f32 %v407, 0.0
        %v424 = vmax.f32 %v409, 0.0
        %v425 = vmax.f32 %v413, 0.0
        %v426 = vmax.f32 %v415, 0.0
        %v427 = vmax.f32 %v417, 0.0
        %v428 = vmax.f32 %v419, 0.0
        %v429 = vpack.c.bf16 %v423, %v421
        %v430 = vpack.c.bf16 %v424, %v422
        %v431 = vpack.c.bf16 %v427, %v425
        %v432 = vpack.c.bf16 %v428, %v426
        %v433 = vld [vmem:[#allocation2] sm:$0xff]
        %v434 = vld [vmem:[#allocation2 + $0x8] sm:$0xff]
        %v435 = vld [vmem:[#allocation2 + $0x10] sm:$0xff]
        %v436 = vld [vmem:[#allocation2 + $0x18] sm:$0xff]
        %v437 = vld [vmem:[#allocation2 + $0x20] sm:$0xff]
        %v438 = vld [vmem:[#allocation2 + $0x28] sm:$0xff]
        %v439 = vld [vmem:[#allocation2 + $0x30] sm:$0xff]
        %v440 = vld [vmem:[#allocation2 + $0x38] sm:$0xff]
        %v441 = vld [vmem:[#allocation2 + $0x40] sm:$0xff]
        %v442 = vld [vmem:[#allocation2 + $0x48] sm:$0xff]
        %v443 = vld [vmem:[#allocation2 + $0x50] sm:$0xff]
        %v444 = vld [vmem:[#allocation2 + $0x58] sm:$0xff]
        %v445 = vld [vmem:[#allocation2 + $0x60] sm:$0xff]
        %v446 = vld [vmem:[#allocation2 + $0x68] sm:$0xff]
        %v447 = vld [vmem:[#allocation2 + $0x70] sm:$0xff]
        %v448 = vld [vmem:[#allocation2 + $0x78] sm:$0xff]
        %v449 = vld [vmem:[#allocation2 + $0x80] sm:$0xff]
        %v450 = vld [vmem:[#allocation2 + $0x88] sm:$0xff]
        %v451 = vld [vmem:[#allocation2 + $0x90] sm:$0xff]
        %v452 = vld [vmem:[#allocation2 + $0x98] sm:$0xff]
        %v453 = vld [vmem:[#allocation2 + $0xa0] sm:$0xff]
        %v454 = vld [vmem:[#allocation2 + $0xa8] sm:$0xff]
        %v455 = vld [vmem:[#allocation2 + $0xb0] sm:$0xff]
        %v456 = vld [vmem:[#allocation2 + $0xb8] sm:$0xff]
        %v457 = vld [vmem:[#allocation2 + $0xc0] sm:$0xff]
        %v458 = vld [vmem:[#allocation2 + $0xc8] sm:$0xff]
        %v459 = vld [vmem:[#allocation2 + $0xd0] sm:$0xff]
        %v460 = vld [vmem:[#allocation2 + $0xd8] sm:$0xff]
        %v461 = vld [vmem:[#allocation2 + $0xe0] sm:$0xff]
        %v462 = vld [vmem:[#allocation2 + $0xe8] sm:$0xff]
        %v463 = vld [vmem:[#allocation2 + $0xf0] sm:$0xff]
        %v464 = vld [vmem:[#allocation2 + $0xf8] sm:$0xff]
        %v465 = vld [vmem:[%s4] sm:$0x3]
        %v467 = vlaneseq
        %v468 = vshrl.u32 %v467, 7
        %v469 = vsub.s32 0, %v468
        %v470 = vrot.slane %v465, %v469
        %v471 = vlaneseq
        %v472 = vshrl.u32 %v471, 7
        %v473 = vsub.s32 1, %v472
        %v474 = vrot.slane %v465, %v473
        %v509 = vunpack.c.l.b16 %v433
        %v510 = vunpack.c.h.b16 %v433
        %v511 = vunpack.c.l.b16 %v434
        %v512 = vunpack.c.h.b16 %v434
        %v513 = vunpack.c.l.b16 %v435
        %v514 = vunpack.c.h.b16 %v435
        %v515 = vunpack.c.l.b16 %v436
        %v516 = vunpack.c.h.b16 %v436
        %v517 = vunpack.c.l.b16 %v437
        %v518 = vunpack.c.h.b16 %v437
        %v519 = vunpack.c.l.b16 %v438
        %v520 = vunpack.c.h.b16 %v438
        %v521 = vunpack.c.l.b16 %v439
        %v522 = vunpack.c.h.b16 %v439
        %v523 = vunpack.c.l.b16 %v440
        %v524 = vunpack.c.h.b16 %v440
        %v525 = vunpack.c.l.b16 %v441
        %v526 = vunpack.c.h.b16 %v441
        %v527 = vunpack.c.l.b16 %v442
        %v528 = vunpack.c.h.b16 %v442
        %v529 = vunpack.c.l.b16 %v443
        %v530 = vunpack.c.h.b16 %v443
        %v531 = vunpack.c.l.b16 %v444
        %v532 = vunpack.c.h.b16 %v444
        %v533 = vunpack.c.l.b16 %v445
        %v534 = vunpack.c.h.b16 %v445
        %v535 = vunpack.c.l.b16 %v446
        %v536 = vunpack.c.h.b16 %v446
        %v537 = vunpack.c.l.b16 %v447
        %v538 = vunpack.c.h.b16 %v447
        %v539 = vunpack.c.l.b16 %v448
        %v540 = vunpack.c.h.b16 %v448
        %v541 = vunpack.c.l.b16 %v449
        %v542 = vunpack.c.h.b16 %v449
        %v543 = vunpack.c.l.b16 %v450
        %v544 = vunpack.c.h.b16 %v450
        %v545 = vunpack.c.l.b16 %v451
        %v546 = vunpack.c.h.b16 %v451
        %v547 = vunpack.c.l.b16 %v452
        %v548 = vunpack.c.h.b16 %v452
        %v549 = vunpack.c.l.b16 %v453
        %v550 = vunpack.c.h.b16 %v453
        %v551 = vunpack.c.l.b16 %v454
        %v552 = vunpack.c.h.b16 %v454
        %v553 = vunpack.c.l.b16 %v455
        %v554 = vunpack.c.h.b16 %v455
        %v555 = vunpack.c.l.b16 %v456
        %v556 = vunpack.c.h.b16 %v456
        %v557 = vunpack.c.l.b16 %v457
        %v558 = vunpack.c.h.b16 %v457
        %v559 = vunpack.c.l.b16 %v458
        %v560 = vunpack.c.h.b16 %v458
        %v561 = vunpack.c.l.b16 %v459
        %v562 = vunpack.c.h.b16 %v459
        %v563 = vunpack.c.l.b16 %v460
        %v564 = vunpack.c.h.b16 %v460
        %v565 = vunpack.c.l.b16 %v461
        %v566 = vunpack.c.h.b16 %v461
        %v567 = vunpack.c.l.b16 %v462
        %v568 = vunpack.c.h.b16 %v462
        %v569 = vunpack.c.l.b16 %v463
        %v570 = vunpack.c.h.b16 %v463
        %v571 = vunpack.c.l.b16 %v464
        %v572 = vunpack.c.h.b16 %v464
        %v573 = vpack.c.b16 %v511, %v509
        %v574 = vpack.c.b16 %v512, %v510
        %v575 = vpack.c.b16 %v515, %v513
        %v576 = vpack.c.b16 %v516, %v514
        %v577 = vpack.c.b16 %v519, %v517
        %v578 = vpack.c.b16 %v520, %v518
        %v579 = vpack.c.b16 %v523, %v521
        %v580 = vpack.c.b16 %v524, %v522
        %v581 = vpack.c.b16 %v527, %v525
        %v582 = vpack.c.b16 %v528, %v526
        %v583 = vpack.c.b16 %v531, %v529
        %v584 = vpack.c.b16 %v532, %v530
        %v585 = vpack.c.b16 %v535, %v533
        %v586 = vpack.c.b16 %v536, %v534
        %v587 = vpack.c.b16 %v539, %v537
        %v588 = vpack.c.b16 %v540, %v538
        %v589 = vpack.c.b16 %v543, %v541
        %v590 = vpack.c.b16 %v544, %v542
        %v591 = vpack.c.b16 %v547, %v545
        %v592 = vpack.c.b16 %v548, %v546
        %v593 = vpack.c.b16 %v551, %v549
        %v594 = vpack.c.b16 %v552, %v550
        %v595 = vpack.c.b16 %v555, %v553
        %v596 = vpack.c.b16 %v556, %v554
        %v597 = vpack.c.b16 %v559, %v557
        %v598 = vpack.c.b16 %v560, %v558
        %v599 = vpack.c.b16 %v563, %v561
        %v600 = vpack.c.b16 %v564, %v562
        %v601 = vpack.c.b16 %v567, %v565
        %v602 = vpack.c.b16 %v568, %v566
        %v603 = vpack.c.b16 %v571, %v569
        %v604 = vpack.c.b16 %v572, %v570
        %637 = vmatprep.subr.bf16.mxu0 %v574
        %638 = vmatpush1.bf16.msra.mxu0 %v573
        %639 = vmatprep.subr.bf16.mxu0 %v576
        %640 = vmatpush1.bf16.msra.mxu0 %v575
        %641 = vmatprep.subr.bf16.mxu0 %v578
        %642 = vmatpush1.bf16.msra.mxu0 %v577
        %643 = vmatprep.subr.bf16.mxu0 %v580
        %644 = vmatpush1.bf16.msra.mxu0 %v579
        %645 = vmatprep.subr.bf16.mxu0 %v582
        %646 = vmatpush1.bf16.msra.mxu0 %v581
        %647 = vmatprep.subr.bf16.mxu0 %v584
        %648 = vmatpush1.bf16.msra.mxu0 %v583
        %649 = vmatprep.subr.bf16.mxu0 %v586
        %650 = vmatpush1.bf16.msra.mxu0 %v585
        %651 = vmatprep.subr.bf16.mxu0 %v588
        %652 = vmatpush1.bf16.msra.mxu0 %v587
        %653 = vmatprep.subr.bf16.mxu0 %v590
        %654 = vmatpush1.bf16.msra.mxu0 %v589
        %655 = vmatprep.subr.bf16.mxu0 %v592
        %656 = vmatpush1.bf16.msra.mxu0 %v591
        %657 = vmatprep.subr.bf16.mxu0 %v594
        %658 = vmatpush1.bf16.msra.mxu0 %v593
        %659 = vmatprep.subr.bf16.mxu0 %v596
        %660 = vmatpush1.bf16.msra.mxu0 %v595
        %661 = vmatprep.subr.bf16.mxu0 %v598
        %662 = vmatpush1.bf16.msra.mxu0 %v597
        %663 = vmatprep.subr.bf16.mxu0 %v600
        %664 = vmatpush1.bf16.msra.mxu0 %v599
        %665 = vmatprep.subr.bf16.mxu0 %v602
        %666 = vmatpush1.bf16.msra.mxu0 %v601
        %667 = vmatprep.subr.bf16.mxu0 %v604
        %668 = vmatpush1.bf16.msra.mxu0 %v603
        %669 = vmatprep.mubr.bf16.mxu0 %v430
        %670 = vmatmul.mubr.bf16.gmra.mrb[0].mxu0 %v429
        %v671 = vpop.f32.mrb[0].mxu0
        %v672 = vadd.f32 %v470, %v671
        %v673 = vpop.f32.mrb[0].mxu0
        %v674 = vadd.f32 %v474, %v673
        %v675 = vpop.f32.mrb[0].mxu0
        %v676 = vadd.f32 %v470, %v675
        %v677 = vpop.f32.mrb[0].mxu0
        %v678 = vadd.f32 %v474, %v677
        %679 = vmatprep.mubr.bf16.mxu0 %v432
        %680 = vmatmul.mubr.bf16.gmra.mrb[0].mxu0 %v431
        %v681 = vpop.f32.mrb[0].mxu0
        %v682 = vadd.f32 %v470, %v681
        %v683 = vpop.f32.mrb[0].mxu0
        %v684 = vadd.f32 %v474, %v683
        %v685 = vpop.f32.mrb[0].mxu0
        %v686 = vadd.f32 %v470, %v685
        %v687 = vpop.f32.mrb[0].mxu0
        %v688 = vadd.f32 %v474, %v687
        %689 = vdwg.mxu0
        %v690 = vmax.f32 %v672, 0.0
        %v691 = vmax.f32 %v674, 0.0
        %v692 = vmax.f32 %v676, 0.0
        %v693 = vmax.f32 %v678, 0.0
        %v694 = vmax.f32 %v682, 0.0
        %v695 = vmax.f32 %v684, 0.0
        %v696 = vmax.f32 %v686, 0.0
        %v697 = vmax.f32 %v688, 0.0
        %v698 = vpack.c.bf16 %v692, %v690
        %v699 = vpack.c.bf16 %v693, %v691
        %v700 = vpack.c.bf16 %v696, %v694
        %v701 = vpack.c.bf16 %v697, %v695
        %v702 = vld [vmem:[#allocation5] sm:$0xf]
        %v703 = vld [vmem:[#allocation5 + $0x4] sm:$0xf]
        %v704 = vld [vmem:[#allocation5 + $0x8] sm:$0xf]
        %v705 = vld [vmem:[#allocation5 + $0xc] sm:$0xf]
        %v706 = vld [vmem:[#allocation5 + $0x10] sm:$0xf]
        %v707 = vld [vmem:[#allocation5 + $0x14] sm:$0xf]
        %v708 = vld [vmem:[#allocation5 + $0x18] sm:$0xf]
        %v709 = vld [vmem:[#allocation5 + $0x1c] sm:$0xf]
        %v710 = vld [vmem:[#allocation5 + $0x20] sm:$0xf]
        %v711 = vld [vmem:[#allocation5 + $0x24] sm:$0xf]
        %v712 = vld [vmem:[#allocation5 + $0x28] sm:$0xf]
        %v713 = vld [vmem:[#allocation5 + $0x2c] sm:$0xf]
        %v714 = vld [vmem:[#allocation5 + $0x30] sm:$0xf]
        %v715 = vld [vmem:[#allocation5 + $0x34] sm:$0xf]
        %v716 = vld [vmem:[#allocation5 + $0x38] sm:$0xf]
        %v717 = vld [vmem:[#allocation5 + $0x3c] sm:$0xf]
        %v718 = vld [vmem:[#allocation5 + $0x40] sm:$0xf]
        %v719 = vld [vmem:[#allocation5 + $0x44] sm:$0xf]
        %v720 = vld [vmem:[#allocation5 + $0x48] sm:$0xf]
        %v721 = vld [vmem:[#allocation5 + $0x4c] sm:$0xf]
        %v722 = vld [vmem:[#allocation5 + $0x50] sm:$0xf]
        %v723 = vld [vmem:[#allocation5 + $0x54] sm:$0xf]
        %v724 = vld [vmem:[#allocation5 + $0x58] sm:$0xf]
        %v725 = vld [vmem:[#allocation5 + $0x5c] sm:$0xf]
        %v726 = vld [vmem:[#allocation5 + $0x60] sm:$0xf]
        %v727 = vld [vmem:[#allocation5 + $0x64] sm:$0xf]
        %v728 = vld [vmem:[#allocation5 + $0x68] sm:$0xf]
        %v729 = vld [vmem:[#allocation5 + $0x6c] sm:$0xf]
        %v730 = vld [vmem:[#allocation5 + $0x70] sm:$0xf]
        %v731 = vld [vmem:[#allocation5 + $0x74] sm:$0xf]
        %v732 = vld [vmem:[#allocation5 + $0x78] sm:$0xf]
        %v733 = vld [vmem:[#allocation5 + $0x7c] sm:$0xf]
        %v734 = vld [vmem:[%s6] sm:$0x1]
        %v736 = vlaneseq
        %v737 = vshrl.u32 %v736, 7
        %v738 = vsub.s32 0, %v737
        %v739 = vrot.slane %v734, %v738
        %v773 = vunpack.c.l.b16 %v702
        %v774 = vunpack.c.l.b16 %v703
        %v775 = vunpack.c.l.b16 %v704
        %v776 = vunpack.c.l.b16 %v705
        %v777 = vunpack.c.l.b16 %v706
        %v778 = vunpack.c.l.b16 %v707
        %v779 = vunpack.c.l.b16 %v708
        %v780 = vunpack.c.l.b16 %v709
        %v781 = vunpack.c.l.b16 %v710
        %v782 = vunpack.c.l.b16 %v711
        %v783 = vunpack.c.l.b16 %v712
        %v784 = vunpack.c.l.b16 %v713
        %v785 = vunpack.c.l.b16 %v714
        %v786 = vunpack.c.l.b16 %v715
        %v787 = vunpack.c.l.b16 %v716
        %v788 = vunpack.c.l.b16 %v717
        %v789 = vunpack.c.l.b16 %v718
        %v790 = vunpack.c.l.b16 %v719
        %v791 = vunpack.c.l.b16 %v720
        %v792 = vunpack.c.l.b16 %v721
        %v793 = vunpack.c.l.b16 %v722
        %v794 = vunpack.c.l.b16 %v723
        %v795 = vunpack.c.l.b16 %v724
        %v796 = vunpack.c.l.b16 %v725
        %v797 = vunpack.c.l.b16 %v726
        %v798 = vunpack.c.l.b16 %v727
        %v799 = vunpack.c.l.b16 %v728
        %v800 = vunpack.c.l.b16 %v729
        %v801 = vunpack.c.l.b16 %v730
        %v802 = vunpack.c.l.b16 %v731
        %v803 = vunpack.c.l.b16 %v732
        %v804 = vunpack.c.l.b16 %v733
        %v805 = vpack.c.b16 %v774, %v773
        %v806 = vpack.c.b16 %v776, %v775
        %v807 = vpack.c.b16 %v778, %v777
        %v808 = vpack.c.b16 %v780, %v779
        %v809 = vpack.c.b16 %v782, %v781
        %v810 = vpack.c.b16 %v784, %v783
        %v811 = vpack.c.b16 %v786, %v785
        %v812 = vpack.c.b16 %v788, %v787
        %v813 = vpack.c.b16 %v790, %v789
        %v814 = vpack.c.b16 %v792, %v791
        %v815 = vpack.c.b16 %v794, %v793
        %v816 = vpack.c.b16 %v796, %v795
        %v817 = vpack.c.b16 %v798, %v797
        %v818 = vpack.c.b16 %v800, %v799
        %v819 = vpack.c.b16 %v802, %v801
        %v820 = vpack.c.b16 %v804, %v803
        %837 = vmatprep.subr.bf16.mxu0 0
        %838 = vmatpush1.bf16.msra.mxu0 %v805
        %839 = vmatprep.subr.bf16.mxu0 0
        %840 = vmatpush1.bf16.msra.mxu0 %v806
        %841 = vmatprep.subr.bf16.mxu0 0
        %842 = vmatpush1.bf16.msra.mxu0 %v807
        %843 = vmatprep.subr.bf16.mxu0 0
        %844 = vmatpush1.bf16.msra.mxu0 %v808
        %845 = vmatprep.subr.bf16.mxu0 0
        %846 = vmatpush1.bf16.msra.mxu0 %v809
        %847 = vmatprep.subr.bf16.mxu0 0
        %848 = vmatpush1.bf16.msra.mxu0 %v810
        %849 = vmatprep.subr.bf16.mxu0 0
        %850 = vmatpush1.bf16.msra.mxu0 %v811
        %851 = vmatprep.subr.bf16.mxu0 0
        %852 = vmatpush1.bf16.msra.mxu0 %v812
        %853 = vmatprep.subr.bf16.mxu0 0
        %854 = vmatpush1.bf16.msra.mxu0 %v813
        %855 = vmatprep.subr.bf16.mxu0 0
        %856 = vmatpush1.bf16.msra.mxu0 %v814
        %857 = vmatprep.subr.bf16.mxu0 0
        %858 = vmatpush1.bf16.msra.mxu0 %v815
        %859 = vmatprep.subr.bf16.mxu0 0
        %860 = vmatpush1.bf16.msra.mxu0 %v816
        %861 = vmatprep.subr.bf16.mxu0 0
        %862 = vmatpush1.bf16.msra.mxu0 %v817
        %863 = vmatprep.subr.bf16.mxu0 0
        %864 = vmatpush1.bf16.msra.mxu0 %v818
        %865 = vmatprep.subr.bf16.mxu0 0
        %866 = vmatpush1.bf16.msra.mxu0 %v819
        %867 = vmatprep.subr.bf16.mxu0 0
        %868 = vmatpush1.bf16.msra.mxu0 %v820
        %869 = vmatprep.mubr.bf16.mxu0 %v699
        %870 = vmatmul.mubr.bf16.gmra.mrb[0].mxu0 %v698
        %v871 = vpop.f32.mrb[0].mxu0
        %v872 = vadd.f32 %v739, %v871
        %v873 = vpop.f32.mrb[0].mxu0
        %v874 = vpop.f32.mrb[0].mxu0
        %v875 = vadd.f32 %v739, %v874
        %v876 = vpop.f32.mrb[0].mxu0
        %877 = vmatprep.mubr.bf16.mxu0 %v701
        %878 = vmatmul.mubr.bf16.gmra.mrb[0].mxu0 %v700
        %v879 = vpop.f32.mrb[0].mxu0
        %v880 = vadd.f32 %v739, %v879
        %v881 = vpop.f32.mrb[0].mxu0
        %v882 = vpop.f32.mrb[0].mxu0
        %v883 = vadd.f32 %v739, %v882
        %v884 = vpop.f32.mrb[0].mxu0
        %885 = vdwg.mxu0
        %886 = vmax.xlane.f32.xlu0 %v872
        %v887 = vpop.xlane.xlu0 %886
        %888 = vmax.xlane.f32.xlu0 %v875
        %v889 = vpop.xlane.xlu0 %888
        %890 = vmax.xlane.f32.xlu0 %v880
        %v891 = vpop.xlane.xlu0 %890
        %892 = vmax.xlane.f32.xlu0 %v883
        %v893 = vpop.xlane.xlu0 %892
        %v894 = vsub.f32 %v872, %v887
        %v895 = vsub.f32 %v875, %v889
        %v896 = vsub.f32 %v880, %v891
        %v897 = vsub.f32 %v883, %v893
        %v898 = vmul.f32 %v894, 1.442695
        %v899 = vpow.pop %v898
        %v900 = vmul.f32 %v895, 1.442695
        %v901 = vpow.pop %v900
        %v902 = vmul.f32 %v896, 1.442695
        %v903 = vpow.pop %v902
        %v904 = vmul.f32 %v897, 1.442695
        %v905 = vpow.pop %v904
        %906 = vadd.xlane.f32.xlu0 %v899
        %v907 = vpop.xlane.xlu0 %906
        %908 = vadd.xlane.f32.xlu0 %v901
        %v909 = vpop.xlane.xlu0 %908
        %910 = vadd.xlane.f32.xlu0 %v903
        %v911 = vpop.xlane.xlu0 %910
        %912 = vadd.xlane.f32.xlu0 %v905
        %v913 = vpop.xlane.xlu0 %912
        %v914 = vrcp.pop %v907
        %v915 = vmul.f32 %v899, %v914
        %v916 = vrcp.pop %v909
        %v917 = vmul.f32 %v901, %v916
        %v918 = vrcp.pop %v911
        %v919 = vmul.f32 %v903, %v918
        %v920 = vrcp.pop %v913
        %v921 = vmul.f32 %v905, %v920
        %922 = vst [vmem:[%s302] sm:$0xff] %v915
        %923 = vst [vmem:[%s302 + $0x8] sm:$0xff] %v917
        %924 = vst [vmem:[%s302 + $0x10] sm:$0xff] %v919
        %925 = vst [vmem:[%s302 + $0x18] sm:$0xff] %v921
        %s926 = sand.u32 %s183, 1
        %s927 = scalar_lea.sflag [#allocation4], %s926
        %s928 = sand.u32 %s183, 1
        %s929 = smul.addr %s928, 32
        %s930 = scalar_lea.vmem [#allocation7], %s929
        // Predicated region
        $region57: #{tpu_custom_call.1} parent=47 // pred_check
          %p931 = pneg %p193
        $region58: #{tpu_custom_call.1} parent=47 // pred_check_branch
          %933 = sbr.rel (%p931) target = $region60
        $region59: #{tpu_custom_call.1} parent=47 // pred_region
          %s934 = smul.u32 4, %s23
          %s936 = ssub.s32 512, 512
          %937 = vsyncadd %s927, %s936
          %s938 = smul.addr %s934, 128
          %s939 = scalar_lea.hbm %s7, %s938
          %s940 = sshll.u32 %s930, 4
          %s941 = int_to_ptr.vmem [resolvable:$true] %s940
          %946 = dma.vmem_to_hbm [thread:$0]  %s941, 512, %s939, %s927, 128, 128, 8
        $region60: #{tpu_custom_call.1} parent=47 // pred_fallthru
          _
      $region48: #{tpu_custom_call.1} parent=5 // pred_fallthru
        _
      %p947 = scmp.le.s32.totalorder 2, %s18
      // Predicated region
      $region61: #{tpu_custom_call.1} parent=5 // pred_check
        %p948 = pneg %p947
      $region62: #{tpu_custom_call.1} parent=5 // pred_check_branch
        %950 = sbr.rel (%p948) target = $region64
      $region63: #{tpu_custom_call.1} parent=5 // pred_region
        %s951 = ssub.s32 %s18, 2
        // Predicated region
        $region65: #{tpu_custom_call.1} parent=63 // pred_check
          %p952 = pneg %p199
        $region66: #{tpu_custom_call.1} parent=63 // pred_check_branch
          %954 = sbr.rel (%p952) target = $region68
        $region67: #{tpu_custom_call.1} parent=63 // pred_region
          %s955 = sand.u32 %s184, 1
          %s956 = scalar_lea.sflag [#allocation4], %s955
          %s957 = sand.u32 %s184, 1
          %s958 = smul.addr %s957, 32
          %s959 = scalar_lea.vmem [#allocation7], %s958
          %960 = dma.done %s956, 512
        $region68: #{tpu_custom_call.1} parent=63 // pred_fallthru
          _
      $region64: #{tpu_custom_call.1} parent=5 // pred_fallthru
        _
    $region6: #{tpu_custom_call.1} parent=1 // loop_footer
      %s22 = sadd.s32 1, %s18
    $region7: #{tpu_custom_call.1} parent=1 // loop_footer_branch
      %17 = sbr.rel target = $region3
    $region8: #{tpu_custom_call.1} parent=1 // loop_exit
      _
    %961 = vsyncpa [#allocation3], 1
    %s962 = scalar_lea.sflag [#allocation3], 1
    %963 = vsyncpa %s962, 1
    %964 = vsyncpa [#allocation6], 1
    %965 = vsyncpa [#allocation4], 1
    %s966 = scalar_lea.sflag [#allocation4], 1
    %967 = vsyncpa %s966, 1

</llo_original>
